<compile_context>
chip_gen: v5e
topology: v5e:2x2
jax: 0.10.0
libtpu: 0.0.40
codegen_flags: <defaults>
</compile_context>

<pallas_src>
import functools

import jax
import jax.numpy as jnp
from jax.experimental import pallas as pl
from jax.experimental.pallas import tpu as pltpu


def _bce_sum_kernel(xr_ref, x_ref, o_ref, acc_ref, *,
                    blocks_per_core, n_rows, block_rows):
    """Accumulates sum(x*log(xr) + (1-x)*log(1-xr)) (positive form) per core."""
    i = pl.program_id(1)

    @pl.when(i == 0)
    def _init():
        acc_ref[...] = jnp.zeros_like(acc_ref)

    # Flat row ids for tail masking: the last block may over-run the array and on TPU
    # the out-of-bounds part of an input block is unspecified, so mask explicitly.
    row0 = (pl.program_id(0) * blocks_per_core + i) * block_rows
    rid = row0 + jax.lax.broadcasted_iota(jnp.int32, (block_rows, 1), 0)
    valid = rid < n_rows                                            # (br, 1)

    xr = xr_ref[...].astype(jnp.float32)
    xt = x_ref[...].astype(jnp.float32)
    # PyTorch BCELoss clamps the log terms at -100 (also makes x==x_rec==1 pad exact 0).
    log_p = jnp.maximum(jnp.log(xr), -100.0)
    log_1mp = jnp.maximum(jnp.log(1.0 - xr), -100.0)
    term = xt * log_p + (1.0 - xt) * log_1mp                        # negated in wrapper
    term = jnp.where(valid, term, 0.0)

    # Sublane reduce into a single (1, lanes) accumulator: 1 add per data vreg.
    acc_ref[...] += jnp.sum(term, axis=0, keepdims=True)

    @pl.when(i == blocks_per_core - 1)
    def _fini():
        o_ref[...] = acc_ref[...].reshape(o_ref.shape)


def _round_up(v, m):
    return ((v + m - 1) // m) * m


def kl_loss(mu, sigma, x, x_rec, beta, *, prior="normal",
            block_rows=2048, lanes=128, n_split=2):
    """Pallas equivalent of klLoss_(prior).forward(Normal(mu, sigma), z, x, x_rec, beta)."""
    if prior != "normal":
        # TODO(synk): closed-form KL for 'beta'/'dirichlet'/'laplace'/LowRankMVN priors
        # (needs lgamma/digamma) is not implemented; only the 'normal' prior path is.
        raise NotImplementedError("only prior='normal' is implemented")

    total = int(x.size)
    rem = total % lanes
    if rem:
        # TODO(synk): this fallback pad rewrites the arrays through HBM; only taken when
        # numel is not a multiple of 128. Padding with (x=1, x_rec=1) contributes exactly 0.
        pad = lanes - rem
        xf = jnp.concatenate([x.reshape(-1), jnp.ones((pad,), x.dtype)])
        xrf = jnp.concatenate([x_rec.reshape(-1), jnp.ones((pad,), x_rec.dtype)])
    else:
        xf = x.reshape(-1)
        xrf = x_rec.reshape(-1)
    rows = (total + lanes - 1) // lanes
    x2 = xf.reshape(rows, lanes)
    xr2 = xrf.reshape(rows, lanes)

    # --- tile sizing, respecting per-chip VMEM (v7x: 64 MiB; v5e/v6e: 128 MiB) ---
    itemsizes = [jnp.dtype(a.dtype).itemsize for a in (x2, xr2)]
    sub = max(8 * max(1, 4 // it) for it in itemsizes)     # sublane multiple per dtype
    tile_item = max(itemsizes)
    try:
        vmem_cap = int(pltpu.get_tpu_info().vmem_capacity_bytes)
    except Exception:
        vmem_cap = 64 << 20
    # 2 inputs x 2 pipeline buffers must fit well inside VMEM (<= ~40% budget).
    per_tile_budget = max(1, int(0.4 * vmem_cap) // 4)
    br_cap = max(sub, (per_tile_budget // (lanes * tile_item)) // sub * sub)
    br = min(int(block_rows), br_cap, _round_up(rows, sub))
    br = max(sub, (br // sub) * sub)

    nblocks = (rows + br - 1) // br
    ns = min(max(int(n_split), 1), nblocks)                # 2-way split (v7x megacore)
    bpc = (nblocks + ns - 1) // ns

    def _row_block(c, i):
        # Clamp so a fully out-of-range block index never issues an OOB DMA; the in-kernel
        # row mask zeroes any contribution from clamped/over-run blocks.
        return (jnp.minimum(c * bpc + i, nblocks - 1), 0)

    tile_bytes = br * lanes * tile_item
    vmem_limit = int(min(vmem_cap, max(4 * tile_bytes + (2 << 20), 16 << 20)))

    kernel = functools.partial(_bce_sum_kernel,
                               blocks_per_core=bpc, n_rows=rows, block_rows=br)

    partials = pl.pallas_call(
        kernel,
        out_shape=jax.ShapeDtypeStruct((ns, 1, lanes), jnp.float32),
        grid=(ns, bpc),
        in_specs=[
            pl.BlockSpec((br, lanes), _row_block),          # x_rec tile
            pl.BlockSpec((br, lanes), _row_block),          # x tile
        ],
        out_specs=pl.BlockSpec((1, 1, lanes), lambda c, i: (c, 0, 0)),
        scratch_shapes=[pltpu.VMEM((1, lanes), jnp.float32)],
        compiler_params=pltpu.CompilerParams(
            dimension_semantics=("parallel", "arbitrary"),
            vmem_limit_bytes=vmem_limit,
        ),
    )(xr2, x2)

    bce_sum = -jnp.sum(partials)

    # Tiny KL(N(mu, sigma) || N(0, 1)) term stays in plain JAX (O(B * z_dim)); this also
    # keeps `beta` usable as a traced scalar (e.g. annealed beta under jit).
    mu_f = jnp.asarray(mu, jnp.float32)
    sig_f = jnp.asarray(sigma, jnp.float32)
    kl_sum = jnp.sum(0.5 * (sig_f * sig_f + mu_f * mu_f - 1.0) - jnp.log(sig_f))

    return bce_sum + beta * kl_sum


def _kl_loss_reference(mu, sigma, x, x_rec, beta):
    """Pure-JAX reference matching the PyTorch semantics (prior='normal')."""
    xr = x_rec.astype(jnp.float32)
    xt = x.astype(jnp.float32)
    log_p = jnp.maximum(jnp.log(xr), -100.0)
    log_1mp = jnp.maximum(jnp.log(1.0 - xr), -100.0)
    bce = -(xt * log_p + (1.0 - xt) * log_1mp)
    mu = mu.astype(jnp.float32)
    sigma = sigma.astype(jnp.float32)
    kl = 0.5 * (sigma ** 2 + mu ** 2 - 1.0) - jnp.log(sigma)
    return jnp.sum(bce) + beta * jnp.sum(kl)


if __name__ == "__main__":
    key = jax.random.PRNGKey(0)
    k1, k2, k3, k4, k5, k6 = jax.random.split(key, 6)

    B, C, H, W = 2, 4, 16, 16
    z_dim = 32
    beta = 0.5

    x = jax.random.uniform(k1, (B, C, H, W), jnp.float32, minval=0.01, maxval=0.99)
    x_rec = jax.nn.sigmoid(jax.random.normal(k2, (B, C, H, W), jnp.float32))
    mu = jax.random.normal(k3, (B, z_dim), jnp.float32)
    sigma = jax.nn.softplus(jax.random.normal(k4, (B, z_dim), jnp.float32)) + 1e-3

    r_ref = _kl_loss_reference(mu, sigma, x, x_rec, beta)

    # 1) default large-tile path (single block).
    r1 = jax.block_until_ready(kl_loss(mu, sigma, x, x_rec, beta))
    assert jnp.allclose(r1, r_ref, rtol=1e-4, atol=1e-1), (r1, r_ref)

    # 2) small tiles, one core-range: exercises multi-step accumulation (init/acc/finalize).
    r2 = jax.block_until_ready(kl_loss(mu, sigma, x, x_rec, beta, block_rows=8, n_split=1))
    assert jnp.allclose(r2, r_ref, rtol=1e-4, atol=1e-1), (r2, r_ref)

    # 3) small tiles, 2-way parallel split: exercises the per-core partial-sum path.
    r3 = jax.block_until_ready(kl_loss(mu, sigma, x, x_rec, beta, block_rows=8, n_split=2))
    assert jnp.allclose(r3, r_ref, rtol=1e-4, atol=1e-1), (r3, r_ref)

    # 4) ragged shape: numel not a multiple of 128 and rows not a multiple of block_rows
    #    -> exercises lane padding + in-kernel tail masking + 2-way split.
    xo = jax.random.uniform(k5, (3, 5, 9, 11), jnp.float32, minval=0.01, maxval=0.99)
    xro = jax.nn.sigmoid(jax.random.normal(k6, (3, 5, 9, 11), jnp.float32))
    r4 = jax.block_until_ready(kl_loss(mu, sigma, xo, xro, beta, block_rows=8, n_split=2))
    r4_ref = _kl_loss_reference(mu, sigma, xo, xro, beta)
    assert jnp.allclose(r4, r4_ref, rtol=1e-4, atol=1e-1), (r4, r4_ref)

    print("KERNEL_OK")
</pallas_src>

<mosaic_0001>
module attributes {stable_mosaic.version = 11 : i64} {
  func.func @_bce_sum_kernel(%arg0: i32, %arg1: i32, %arg2: memref<16x128xf32, #tpu.memory_space<vmem>>, %arg3: memref<16x128xf32, #tpu.memory_space<vmem>>, %arg4: memref<1x1x128xf32, #tpu.memory_space<vmem>>, %arg5: memref<1x128xf32, #tpu.memory_space<vmem>>) attributes {dimension_semantics = [#tpu.dimension_semantics<parallel>, #tpu.dimension_semantics<arbitrary>], iteration_bounds = array<i64: 1, 1>, scalar_prefetch = 0 : i64, scratch_operands = 1 : i64, tpu.core_type = #tpu.core_type<tc>, window_params = [{transform_indices = @transform_0, window_bounds = array<i64: 16, 128>}, {transform_indices = @transform_1, window_bounds = array<i64: 16, 128>}, {transform_indices = @transform_2, window_bounds = array<i64: 1, 1, 128>}]} {
    %c0_i32 = arith.constant 0 : i32
    %0 = arith.cmpi eq, %arg1, %c0_i32 : i32
    %1 = arith.extui %0 : i1 to i32
    %c0_i32_0 = arith.constant 0 : i32
    %2 = arith.cmpi ne, %1, %c0_i32_0 : i32
    scf.if %2 {
      %cst_16 = arith.constant 0.000000e+00 : f32
      %38 = vector.broadcast %cst_16 : f32 to vector<1x128xf32>
      %c0_17 = arith.constant 0 : index
      %c0_18 = arith.constant 0 : index
      %39 = vector.load %arg5[%c0_17, %c0_18] : memref<1x128xf32, #tpu.memory_space<vmem>>, vector<1x128xf32>
      tpu.vector_store %arg5[%c0_17, %c0_18], %38 {strides = array<i32>} : memref<1x128xf32, #tpu.memory_space<vmem>>, vector<1x128xf32>,
    } else {
    }
    %c1_i32 = arith.constant 1 : i32
    %3 = arith.muli %arg0, %c1_i32 : i32
    %4 = arith.addi %3, %arg1 : i32
    %c16_i32 = arith.constant 16 : i32
    %5 = arith.muli %4, %c16_i32 : i32
    %6 = tpu.iota {dimensions = array<i32: 0>} : vector<16x1xi32>
    %7 = vector.broadcast %5 : i32 to vector<16x1xi32>
    %8 = arith.addi %7, %6 : vector<16x1xi32>
    %c16_i32_1 = arith.constant 16 : i32
    %9 = vector.broadcast %c16_i32_1 : i32 to vector<16x1xi32>
    %10 = arith.cmpi slt, %8, %9 : vector<16x1xi32>
    %c0 = arith.constant 0 : index
    %c0_2 = arith.constant 0 : index
    %11 = vector.load %arg2[%c0, %c0_2] : memref<16x128xf32, #tpu.memory_space<vmem>>, vector<16x128xf32>
    %c0_3 = arith.constant 0 : index
    %c0_4 = arith.constant 0 : index
    %12 = vector.load %arg3[%c0_3, %c0_4] : memref<16x128xf32, #tpu.memory_space<vmem>>, vector<16x128xf32>
    %13 = math.log %11 : vector<16x128xf32>
    %cst = arith.constant -1.000000e+02 : f32
    %14 = vector.broadcast %cst : f32 to vector<16x128xf32>
    %15 = arith.maximumf %13, %14 : vector<16x128xf32>
    %cst_5 = arith.constant 1.000000e+00 : f32
    %16 = vector.broadcast %cst_5 : f32 to vector<16x128xf32>
    %17 = arith.subf %16, %11 : vector<16x128xf32>
    %18 = math.log %17 : vector<16x128xf32>
    %cst_6 = arith.constant -1.000000e+02 : f32
    %19 = vector.broadcast %cst_6 : f32 to vector<16x128xf32>
    %20 = arith.maximumf %18, %19 : vector<16x128xf32>
    %21 = arith.mulf %12, %15 : vector<16x128xf32>
    %cst_7 = arith.constant 1.000000e+00 : f32
    %22 = vector.broadcast %cst_7 : f32 to vector<16x128xf32>
    %23 = arith.subf %22, %12 : vector<16x128xf32>
    %24 = arith.mulf %23, %20 : vector<16x128xf32>
    %25 = arith.addf %21, %24 : vector<16x128xf32>
    %cst_8 = arith.constant 0.000000e+00 : f32
    %26 = vector.shape_cast %10 : vector<16x1xi1> to vector<16x1xi1>
    %27 = vector.broadcast %26 : vector<16x1xi1> to vector<16x128xi1>
    %28 = vector.broadcast %cst_8 : f32 to vector<16x128xf32>
    %29 = arith.select %27, %25, %28 : vector<16x128xi1>, vector<16x128xf32>
    %c0_9 = arith.constant 0 : index
    %c0_10 = arith.constant 0 : index
    %30 = vector.load %arg5[%c0_9, %c0_10] : memref<1x128xf32, #tpu.memory_space<vmem>>, vector<1x128xf32>
    %cst_11 = arith.constant dense<0.000000e+00> : vector<128xf32>
    %31 = vector.multi_reduction <add>, %29, %cst_11 [0] : vector<16x128xf32> to vector<128xf32>
    %32 = vector.shape_cast %31 : vector<128xf32> to vector<1x128xf32>
    %33 = arith.addf %30, %32 : vector<1x128xf32>
    %c0_12 = arith.constant 0 : index
    %c0_13 = arith.constant 0 : index
    %34 = vector.load %arg5[%c0_12, %c0_13] : memref<1x128xf32, #tpu.memory_space<vmem>>, vector<1x128xf32>
    tpu.vector_store %arg5[%c0_12, %c0_13], %33 {strides = array<i32>} : memref<1x128xf32, #tpu.memory_space<vmem>>, vector<1x128xf32>,
    %c0_i32_14 = arith.constant 0 : i32
    %35 = arith.cmpi eq, %arg1, %c0_i32_14 : i32
    %36 = arith.extui %35 : i1 to i32
    %c0_i32_15 = arith.constant 0 : i32
    %37 = arith.cmpi ne, %36, %c0_i32_15 : i32
    scf.if %37 {
      %c0_16 = arith.constant 0 : index
      %c0_17 = arith.constant 0 : index
      %38 = vector.load %arg5[%c0_16, %c0_17] : memref<1x128xf32, #tpu.memory_space<vmem>>, vector<1x128xf32>
      %39 = vector.shape_cast %38 : vector<1x128xf32> to vector<1x1x128xf32>
      %c0_18 = arith.constant 0 : index
      %c0_19 = arith.constant 0 : index
      %c0_20 = arith.constant 0 : index
      %40 = vector.load %arg4[%c0_18, %c0_19, %c0_20] : memref<1x1x128xf32, #tpu.memory_space<vmem>>, vector<1x1x128xf32>
      tpu.vector_store %arg4[%c0_18, %c0_19, %c0_20], %39 {strides = array<i32>} : memref<1x1x128xf32, #tpu.memory_space<vmem>>, vector<1x1x128xf32>,
    } else {
    }
    return
  }
  func.func @transform_0(%arg0: i32, %arg1: i32) -> (i32, i32) {
    %c1_i32 = arith.constant 1 : i32
    %0 = arith.muli %arg0, %c1_i32 : i32
    %1 = arith.addi %0, %arg1 : i32
    %c0_i32 = arith.constant 0 : i32
    %2 = arith.minsi %1, %c0_i32 : i32
    %c0_i32_0 = arith.constant 0 : i32
    %c0_i32_1 = arith.constant 0 : i32
    return %2, %c0_i32_0 : i32, i32
  }
  func.func @transform_1(%arg0: i32, %arg1: i32) -> (i32, i32) {
    %c1_i32 = arith.constant 1 : i32
    %0 = arith.muli %arg0, %c1_i32 : i32
    %1 = arith.addi %0, %arg1 : i32
    %c0_i32 = arith.constant 0 : i32
    %2 = arith.minsi %1, %c0_i32 : i32
    %c0_i32_0 = arith.constant 0 : i32
    %c0_i32_1 = arith.constant 0 : i32
    return %2, %c0_i32_0 : i32, i32
  }
  func.func @transform_2(%arg0: i32, %arg1: i32) -> (i32, i32, i32) {
    %c0_i32 = arith.constant 0 : i32
    %c0_i32_0 = arith.constant 0 : i32
    %c0_i32_1 = arith.constant 0 : i32
    return %arg0, %c0_i32, %c0_i32_0 : i32, i32, i32
  }
}

</mosaic_0001>

<llo_original>
// kernel: tpu_custom_call.1
$region0: #{tpu_custom_call.1}
  #allocation0 [shape = 'u32[]', space=smem, size = 0x4, offset = 0x4, fixed_abs, tag = 'smem constant byte address 0x4 - core index']
  #allocation1 [shape = 'u32[72,128]{1,0:T(1,128)}', space=vmem, size = 0x9000, scoped, tag = 'internal scratch']
  #allocation2 [shape = 'f32[1,128]{1,0:T(1,128)}', space=vmem, size = 0x200, scoped, tag = 'scratch operand']
  %s0 = inlined_call_operand.hbm [shape: f32[16,128], index: 0, kind: input, shape index: {}]
  %s1 = inlined_call_operand.hbm [shape: f32[16,128], index: 1, kind: input, shape index: {}]
  %s2 = inlined_call_operand.hbm [shape: f32[1,1,128], index: 2, kind: output, shape index: {}]
  %s3 = sld [smem:[#allocation0]]
  $region34: #{tpu_custom_call.1} parent=0
    _
  %s5 = ssub.s32 1, %s3
  %s6 = scalar_select 0, %s5, %s3
  $region1: #{tpu_custom_call.1} parent=0
    #allocation3 [shape = 'u8[8192]{0}', space=vmem, size = 0x2000, scoped, tag = 'input window, operand 0, single buffered']
    #allocation4 [shape = 's32[1]{0}', space=sflag, size = 0x4, scoped, tag = 'scoped memory for tpu_custom_call.1']
    #allocation5 [shape = 's32[1]{0}', space=sflag, size = 0x4, scoped, tag = 'scoped memory for tpu_custom_call.1']
    #allocation6 [shape = 'u8[8192]{0}', space=vmem, size = 0x2000, scoped, tag = 'input window, operand 1, single buffered']
    #allocation7 [shape = 's32[1]{0}', space=sflag, size = 0x4, scoped, tag = 'scoped memory for tpu_custom_call.1']
    #allocation8 [shape = 'u8[512]{0}', space=vmem, size = 0x400, scoped, tag = 'output window, operand 0, single buffered']
    %7 = vsyncpa [#allocation4], 0
    %8 = vsyncpa [#allocation7], 0
    %9 = vsyncpa [#allocation5], 0
    // Predicated region
    $region2: #{tpu_custom_call.1} parent=1 // pred_check
      _
    $region3: #{tpu_custom_call.1} parent=1 // pred_check_branch
      %11 = sbr.rel (0) target = $region5
    $region4: #{tpu_custom_call.1} parent=1 // pred_region
      %s12 = sadd.s32 0, 0
      %p13 = scmp.lt.s32.totalorder %s12, 0
      %s14 = scalar_select %p13, %s12, 0
      %s15 = smul.u32 2, %s14
      %17 = vsyncadd [#allocation4], 0
      %s18 = smul.addr %s15, 8
      %s19 = scalar_lea.hbm %s0, %s18
      %s20 = sshll.u32 %s19, 4
      %s21 = int_to_ptr.hbm [resolvable:$true] %s20
      %s22 = sshll.u32 [#allocation3], 4
      %s23 = int_to_ptr.vmem [resolvable:$true] %s22
      %28 = dma.hbm_to_vmem [thread:$0]  %s21, 256, %s23, [#allocation4], 128, 128, 8
    $region5: #{tpu_custom_call.1} parent=1 // pred_fallthru
      _
    // Predicated region
    $region6: #{tpu_custom_call.1} parent=1 // pred_check
      _
    $region7: #{tpu_custom_call.1} parent=1 // pred_check_branch
      %30 = sbr.rel (0) target = $region9
    $region8: #{tpu_custom_call.1} parent=1 // pred_region
      %s31 = sadd.s32 0, 0
      %p32 = scmp.lt.s32.totalorder %s31, 0
      %s33 = scalar_select %p32, %s31, 0
      %s34 = smul.u32 2, %s33
      %36 = vsyncadd [#allocation7], 0
      %s37 = smul.addr %s34, 8
      %s38 = scalar_lea.hbm %s1, %s37
      %s39 = sshll.u32 %s38, 4
      %s40 = int_to_ptr.hbm [resolvable:$true] %s39
      %s41 = sshll.u32 [#allocation6], 4
      %s42 = int_to_ptr.vmem [resolvable:$true] %s41
      %47 = dma.hbm_to_vmem [thread:$0]  %s40, 256, %s42, [#allocation7], 128, 128, 8
    $region9: #{tpu_custom_call.1} parent=1 // pred_fallthru
      _
    // Predicated region
    $region10: #{tpu_custom_call.1} parent=1 // pred_check
      _
    $region11: #{tpu_custom_call.1} parent=1 // pred_check_branch
      %49 = sbr.rel (0) target = $region13
    $region12: #{tpu_custom_call.1} parent=1 // pred_region
      %51 = dma.done [#allocation4], 256
    $region13: #{tpu_custom_call.1} parent=1 // pred_fallthru
      _
    // Predicated region
    $region14: #{tpu_custom_call.1} parent=1 // pred_check
      _
    $region15: #{tpu_custom_call.1} parent=1 // pred_check_branch
      %53 = sbr.rel (0) target = $region17
    $region16: #{tpu_custom_call.1} parent=1 // pred_region
      %55 = dma.done [#allocation7], 256
    $region17: #{tpu_custom_call.1} parent=1 // pred_fallthru
      _
    %s56 = sadd.s32 0, 0
    %p57 = scmp.lt.s32.totalorder %s56, 0
    %s58 = scalar_select %p57, %s56, 0
    %s59 = smul.u32 2, %s58
    %s60 = sadd.s32 0, 0
    %p61 = scmp.lt.s32.totalorder %s60, 0
    %s62 = scalar_select %p61, %s60, 0
    %s63 = smul.u32 2, %s62
    %p64 = scmp.eq.s32.totalorder 0, 0
    // Predicated region
    $region18: #{tpu_custom_call.1} parent=1 // pred_check
      %p65 = pneg %p64
    $region19: #{tpu_custom_call.1} parent=1 // pred_check_branch
      %67 = sbr.rel (%p65) target = $region21
    $region20: #{tpu_custom_call.1} parent=1 // pred_region
      %68 = vst [vmem:[#allocation2] sm:$0x1] 0.0
    $region21: #{tpu_custom_call.1} parent=1 // pred_fallthru
      _
    %s69 = sadd.s32 0, 0
    %s70 = smul.u32 %s69, 16
    %v71 = vlaneseq
    %v72 = vshrl.u32 %v71, 7
    %v73 = vadd.s32 %v72, 8
    %v74 = vstv %s70
    %v75 = vadd.s32 %v74, %v72
    %v76 = vadd.s32 %v74, %v73
    %vm77 = vcmp.lt.s32.totalorder %v75, 16
    %vm78 = vcmp.lt.s32.totalorder %v76, 16
    %v79 = vld [vmem:[#allocation3] sm:$0xff]
    %v80 = vld [vmem:[#allocation3 + $0x8] sm:$0xff]
    %v81 = vld [vmem:[#allocation6] sm:$0xff]
    %v82 = vld [vmem:[#allocation6 + $0x8] sm:$0xff]
    %v83 = vlog2.pop %v79
    %v84 = vmul.f32 %v83, 0.6931472
    %v85 = vlog2.pop %v80
    %v86 = vmul.f32 %v85, 0.6931472
    %v87 = vmax.f32 %v84, -100.0
    %v88 = vmax.f32 %v86, -100.0
    %v89 = vsub.f32 1.0, %v79
    %v90 = vsub.f32 1.0, %v80
    %v91 = vlog2.pop %v89
    %v92 = vmul.f32 %v91, 0.6931472
    %v93 = vlog2.pop %v90
    %v94 = vmul.f32 %v93, 0.6931472
    %v95 = vmax.f32 %v92, -100.0
    %v96 = vmax.f32 %v94, -100.0
    %v97 = vmul.f32 %v81, %v87
    %v98 = vmul.f32 %v82, %v88
    %v99 = vsub.f32 1.0, %v81
    %v100 = vsub.f32 1.0, %v82
    %v101 = vmul.f32 %v99, %v95
    %v102 = vmul.f32 %v100, %v96
    %v103 = vadd.f32 %v97, %v101
    %v104 = vadd.f32 %v98, %v102
    %v105 = vsel %vm77, 1, 0
    %v106 = vsel %vm78, 1, 0
    %vm107 = vcmp.eq.s32.totalorder %v105, 1
    %vm108 = vcmp.eq.s32.totalorder %v106, 1
    %v109 = vsel %vm107, %v103, 0.0
    %v110 = vsel %vm108, %v104, 0.0
    %v111 = vld [vmem:[#allocation2] sm:$0x1]
    %v112 = vadd.f32 %v109, %v110
    %v113 = vrot.slane %v112, 4
    %v114 = vadd.f32 %v112, %v113
    %v115 = vrot.slane %v114, 2
    %v116 = vadd.f32 %v114, %v115
    %v117 = vrot.slane %v116, 1
    %v118 = vadd.f32 %v116, %v117
    %v119 = vadd.f32 %v111, %v118
    %120 = vst [vmem:[#allocation2] sm:$0x1] %v119
    // Predicated region
    $region22: #{tpu_custom_call.1} parent=1 // pred_check
      %p121 = pneg %p64
    $region23: #{tpu_custom_call.1} parent=1 // pred_check_branch
      %123 = sbr.rel (%p121) target = $region25
    $region24: #{tpu_custom_call.1} parent=1 // pred_region
      %v124 = vld [vmem:[#allocation2] sm:$0x1]
      %125 = vst [vmem:[#allocation8] sm:$0x1] %v124
    $region25: #{tpu_custom_call.1} parent=1 // pred_fallthru
      _
    // Predicated region
    $region26: #{tpu_custom_call.1} parent=1 // pred_check
      _
    $region27: #{tpu_custom_call.1} parent=1 // pred_check_branch
      %127 = sbr.rel (0) target = $region29
    $region28: #{tpu_custom_call.1} parent=1 // pred_region
      %129 = vsyncadd [#allocation5], 0
      %s131 = sshll.u32 [#allocation8], 4
      %s132 = int_to_ptr.vmem [resolvable:$true] %s131
      %s133 = sshll.u32 %s2, 4
      %s134 = int_to_ptr.hbm [resolvable:$true] %s133
      %136 = dma.vmem_to_hbm [thread:$0]  %s132, 16, %s134, [#allocation5]
    $region29: #{tpu_custom_call.1} parent=1 // pred_fallthru
      _
    // Predicated region
    $region30: #{tpu_custom_call.1} parent=1 // pred_check
      _
    $region31: #{tpu_custom_call.1} parent=1 // pred_check_branch
      %138 = sbr.rel (0) target = $region33
    $region32: #{tpu_custom_call.1} parent=1 // pred_region
      %140 = dma.done [#allocation5], 16
    $region33: #{tpu_custom_call.1} parent=1 // pred_fallthru
      _
    %141 = vsyncpa [#allocation4], 1
    %142 = vsyncpa [#allocation7], 1
    %143 = vsyncpa [#allocation5], 1

</llo_original>
